<compile_context>
chip_gen: v7x
topology: tpu7x:2x2x1
jax: 0.10.0
libtpu: 0.0.40
codegen_flags: <defaults>
</compile_context>

<pallas_src>
import jax
import jax.numpy as jnp
from jax.experimental import pallas as pl
from jax.experimental.pallas import tpu as pltpu


def _folded_mlp_kernel(xt_ref, w_ref, b_ref, o_ref):
    """One batch tile: sigmoid(W.T x + b), fully lane-dense.

    xt_ref: (F, TB)  feature-major input tile (lanes = batch, streamed)
    w_ref : (F, 1)   folded weight column (VMEM-resident)
    b_ref : (1, 1)   folded bias          (VMEM-resident)
    o_ref : (1, TB)  lane-dense output tile
    """
    xt = xt_ref[...]                                   # (F, TB)
    w = w_ref[...]                                     # (F, 1) -> broadcast over lanes
    z = jnp.sum(xt * w, axis=0, keepdims=True) + b_ref[...]      # (1, TB) lane-dense
    # sigmoid(z) == 0.5 * tanh(0.5 * z) + 0.5  (single EUP op, exact identity)
    o_ref[...] = (0.5 * jnp.tanh(0.5 * z) + 0.5).astype(o_ref.dtype)


def _round_up(n, m):
    return ((n + m - 1) // m) * m


def nn_classifier_forward(x, params, *, block_b=16384):
    """x: (B, 42) float32. params: w1..w4 stored as (in, out), b1..b4 as (1, out)."""
    B, F = x.shape
    LANE = 128

    # Exact affine fold of fc1..fc4 (no nonlinearity between them).
    w = params["w1"] @ params["w2"] @ params["w3"] @ params["w4"]          # (F, 1)
    b = ((params["b1"] @ params["w2"] + params["b2"]) @ params["w3"]
         + params["b3"]) @ params["w4"] + params["b4"]                     # (1, 1)

    # Batch lives on the lane axis -> tile must be a multiple of 128 lanes.
    block_b = max(LANE, _round_up(block_b, LANE))
    b_pad = _round_up(B, LANE)
    # Guarantee >= 2 grid steps when the batch allows it (v7x megacore sharding).
    if b_pad // block_b < 2:
        block_b = max(LANE, _round_up(pl.cdiv(b_pad, 2), LANE))
    num_tiles = pl.cdiv(b_pad, block_b)
    b_pad = num_tiles * block_b

    # Feature-major layout: (F, B), batch padded along the lane axis.
    xt = x.T
    if b_pad != B:
        xt = jnp.pad(xt, ((0, 0), (0, b_pad - B)))

    out = pl.pallas_call(
        _folded_mlp_kernel,
        out_shape=jax.ShapeDtypeStruct((1, b_pad), jnp.float32),
        grid=(num_tiles,),
        in_specs=[
            pl.BlockSpec((F, block_b), lambda i: (0, i)),   # x: pipelined batch tiles
            pl.BlockSpec((F, 1), lambda i: (0, 0)),         # folded W: VMEM-resident
            pl.BlockSpec((1, 1), lambda i: (0, 0)),         # folded b: VMEM-resident
        ],
        out_specs=pl.BlockSpec((1, block_b), lambda i: (0, i)),  # lane-dense stores
        compiler_params=pltpu.CompilerParams(
            dimension_semantics=("parallel",),              # v7x: 2 TCs share batch grid
            vmem_limit_bytes=32 * 1024 * 1024,
        ),
    )(xt, w, b)
    return out[0, :B].reshape(B, 1)


def init_params(key):
    """Deterministic init mirroring nn.Linear shapes (weights stored as (in, out))."""
    dims = [(42, 30), (30, 20), (20, 10), (10, 1)]
    params = {}
    for i, (fin, fout) in enumerate(dims, start=1):
        key, kw, kb = jax.random.split(key, 3)
        bound = 1.0 / jnp.sqrt(fin)   # PyTorch default uniform(-1/sqrt(fan_in), +1/sqrt(fan_in))
        params[f"w{i}"] = jax.random.uniform(
            kw, (fin, fout), jnp.float32, minval=-bound, maxval=bound)
        params[f"b{i}"] = jax.random.uniform(
            kb, (1, fout), jnp.float32, minval=-bound, maxval=bound)
    return params


def reference_forward(x, params):
    """Unfolded 4-layer forward, matching the PyTorch module exactly."""
    h = x @ params["w1"] + params["b1"]
    h = h @ params["w2"] + params["b2"]
    h = h @ params["w3"] + params["b3"]
    z = h @ params["w4"] + params["b4"]
    return 1.0 / (1.0 + jnp.exp(-z))


if __name__ == "__main__":
    key = jax.random.PRNGKey(0)
    key, kx = jax.random.split(key)

    B = 1000                                   # deliberately not a tile multiple
    x = jax.random.normal(kx, (B, 42), jnp.float32)
    params = init_params(key)

    out = nn_classifier_forward(x, params)     # adaptive tiling -> 2 tiles of 512 lanes
    out = jax.block_until_ready(out)

    ref = reference_forward(x, params)
    assert out.shape == (B, 1)
    assert jnp.allclose(out, ref, atol=1e-5, rtol=1e-4), \
        float(jnp.max(jnp.abs(out - ref)))

    print("KERNEL_OK")
</pallas_src>

<mosaic_0001>
module attributes {stable_mosaic.version = 11 : i64} {
  func.func @_folded_mlp_kernel(%arg0: i32, %arg1: memref<42x512xf32, #tpu.memory_space<vmem>>, %arg2: memref<42x1xf32, #tpu.memory_space<vmem>>, %arg3: memref<1x1xf32, #tpu.memory_space<vmem>>, %arg4: memref<1x512xf32, #tpu.memory_space<vmem>>) attributes {dimension_semantics = [#tpu.dimension_semantics<parallel>], iteration_bounds = array<i64: 2>, scalar_prefetch = 0 : i64, scratch_operands = 0 : i64, tpu.core_type = #tpu.core_type<tc>, window_params = [{transform_indices = @transform_0, window_bounds = array<i64: 42, 512>}, {pipeline_mode = #tpu.pipeline_mode<synchronous>, transform_indices = @transform_1, window_bounds = array<i64: 42, 1>}, {pipeline_mode = #tpu.pipeline_mode<synchronous>, transform_indices = @transform_2, window_bounds = array<i64: 1, 1>}, {transform_indices = @transform_3, window_bounds = array<i64: 1, 512>}]} {
    %c0 = arith.constant 0 : index
    %c0_0 = arith.constant 0 : index
    %0 = vector.load %arg1[%c0, %c0_0] : memref<42x512xf32, #tpu.memory_space<vmem>>, vector<42x512xf32>
    %c0_1 = arith.constant 0 : index
    %c0_2 = arith.constant 0 : index
    %1 = vector.load %arg2[%c0_1, %c0_2] : memref<42x1xf32, #tpu.memory_space<vmem>>, vector<42x1xf32>
    %2 = vector.broadcast %1 : vector<42x1xf32> to vector<42x512xf32>
    %3 = arith.mulf %0, %2 : vector<42x512xf32>
    %cst = arith.constant dense<0.000000e+00> : vector<512xf32>
    %4 = vector.multi_reduction <add>, %3, %cst [0] : vector<42x512xf32> to vector<512xf32>
    %5 = vector.shape_cast %4 : vector<512xf32> to vector<1x512xf32>
    %c0_3 = arith.constant 0 : index
    %c0_4 = arith.constant 0 : index
    %6 = vector.load %arg3[%c0_3, %c0_4] : memref<1x1xf32, #tpu.memory_space<vmem>>, vector<1x1xf32>
    %7 = vector.broadcast %6 : vector<1x1xf32> to vector<1x512xf32>
    %8 = arith.addf %5, %7 : vector<1x512xf32>
    %cst_5 = arith.constant 5.000000e-01 : f32
    %9 = vector.broadcast %cst_5 : f32 to vector<1x512xf32>
    %10 = arith.mulf %9, %8 : vector<1x512xf32>
    %11 = math.tanh %10 : vector<1x512xf32>
    %cst_6 = arith.constant 5.000000e-01 : f32
    %12 = vector.broadcast %cst_6 : f32 to vector<1x512xf32>
    %13 = arith.mulf %12, %11 : vector<1x512xf32>
    %cst_7 = arith.constant 5.000000e-01 : f32
    %14 = vector.broadcast %cst_7 : f32 to vector<1x512xf32>
    %15 = arith.addf %13, %14 : vector<1x512xf32>
    %c0_8 = arith.constant 0 : index
    %c0_9 = arith.constant 0 : index
    %16 = vector.load %arg4[%c0_8, %c0_9] : memref<1x512xf32, #tpu.memory_space<vmem>>, vector<1x512xf32>
    tpu.vector_store %arg4[%c0_8, %c0_9], %15 {strides = array<i32>} : memref<1x512xf32, #tpu.memory_space<vmem>>, vector<1x512xf32>,
    return
  }
  func.func @transform_0(%arg0: i32) -> (i32, i32) {
    %c0_i32 = arith.constant 0 : i32
    %c0_i32_0 = arith.constant 0 : i32
    return %c0_i32, %arg0 : i32, i32
  }
  func.func @transform_1(%arg0: i32) -> (i32, i32) {
    %c0_i32 = arith.constant 0 : i32
    %c0_i32_0 = arith.constant 0 : i32
    %c0_i32_1 = arith.constant 0 : i32
    return %c0_i32, %c0_i32_0 : i32, i32
  }
  func.func @transform_2(%arg0: i32) -> (i32, i32) {
    %c0_i32 = arith.constant 0 : i32
    %c0_i32_0 = arith.constant 0 : i32
    %c0_i32_1 = arith.constant 0 : i32
    return %c0_i32, %c0_i32_0 : i32, i32
  }
  func.func @transform_3(%arg0: i32) -> (i32, i32) {
    %c0_i32 = arith.constant 0 : i32
    %c0_i32_0 = arith.constant 0 : i32
    return %c0_i32, %arg0 : i32, i32
  }
}

</mosaic_0001>

<llo_original>
// kernel: tpu_custom_call.1
$region0: #{tpu_custom_call.1}
  #allocation0 [shape = 'u32[]', space=smem, size = 0x4, offset = 0x4, fixed_abs, tag = 'smem constant byte address 0x4 - core index']
  #allocation1 [shape = 'u32[144,128]{1,0:T(1,128)}', space=vmem, size = 0x12000, scoped, tag = 'internal scratch']
  #allocation2 [shape = 'f32[1,1]{1,0:T(1,128)S(1)}', space=vmem, size = 0x200, scoped, tag = 'scoped memory for tpu_custom_call.1']
  %s0 = inlined_call_operand.hbm [shape: f32[42,1024], index: 0, kind: input, shape index: {}]
  %s1 = inlined_call_operand.vmem [shape: f32[42,1], index: 1, kind: input, shape index: {}]
  %s2 = inlined_call_operand.<no memory space> [shape: f32[1,1], index: 2, kind: input, shape index: {}]
  %s3 = inlined_call_operand.hbm [shape: f32[1,1024], index: 3, kind: output, shape index: {}]
  %s4 = sld [smem:[#allocation0]]
  $region49: #{tpu_custom_call.1} parent=0
    _
  %s6 = ssub.s32 1, %s4
  %s7 = scalar_select 0, %s6, %s4
  %v8 = vstv %s2
  %9 = vst [vmem:[#allocation2] sm:$0x1] %v8
  $region1: #{tpu_custom_call.1} parent=0
    #allocation3 [shape = 'u8[196608]{0}', space=vmem, size = 0x30000, scoped, tag = 'input window, operand 0']
    #allocation4 [shape = 's32[2]{0}', space=sflag, size = 0x8, scoped, tag = 'scoped memory for tpu_custom_call.1']
    #allocation5 [shape = 's32[2]{0}', space=sflag, size = 0x8, scoped, tag = 'scoped memory for tpu_custom_call.1']
    #allocation6 [shape = 'u8[4096]{0}', space=vmem, size = 0x1000, scoped, tag = 'output window, operand 0']
    %10 = vsyncpa [#allocation4], 0
    %s11 = scalar_lea.sflag [#allocation4], 1
    %12 = vsyncpa %s11, 0
    %13 = vsyncpa [#allocation5], 0
    %s14 = scalar_lea.sflag [#allocation5], 1
    %15 = vsyncpa %s14, 0
    loop: start=0, step=1, limit=4
    $region2: #{tpu_custom_call.1} parent=1 // loop_pre_header
      _
    $region3: #{tpu_custom_call.1} parent=1 // loop_header
      %s17 = sphi 0, %s21
      %p18 = scmp.ge.s32.totalorder %s17, 4
      %s27 = sphi 0, %s29
      %s30 = sphi 0, %s27
      %s31 = sphi 0, %s30
      %s47 = sphi 0, %s31
      %s51 = sphi 0, %s51
      %s53 = sphi 0, %s51
      %s54 = sphi 0, %s53
      %s68 = sphi 0, %s54
      %s72 = sphi 0, %s72
      %s74 = sphi 0, %s72
      %s75 = sphi 0, %s74
      %s89 = sphi 0, %s75
      %s95 = sphi 0, %s97
      %s98 = sphi 0, %s95
      %s99 = sphi 0, %s98
      %s115 = sphi 0, %s99
    $region4: #{tpu_custom_call.1} parent=1 // loop_header_branch
      %20 = sbr.rel (%p18) target = $region8
    $region5: #{tpu_custom_call.1} parent=1 // loop_body
      %s22 = ssub.s32 %s17, 1
      %s23 = ssub.s32 %s17, 2
      %s24 = sadd.s32 %s17, 1
      %s25 = ssub.s32 %s17, %s24
      %p26 = scmp.eq.s32.totalorder %s25, 0
      %s28 = sadd.s32 %s27, 1
      %s29 = scalar_select %p26, %s27, %s28
      %p32 = pneg %p26
      %p33 = scmp.eq.s32.totalorder %s17, 1
      %p34 = por %p32, %p33
      %p35 = scmp.ne.s32.totalorder %s27, %s30
      %p36 = scmp.eq.s32.totalorder %s17, 0
      %p37 = por %p35, %p36
      %p38 = scmp.ne.s32.totalorder %s27, %s30
      %p39 = scmp.eq.s32.totalorder %s22, 1
      %p40 = por %p38, %p39
      %p41 = scmp.ne.s32.totalorder %s30, %s31
      %p42 = scmp.eq.s32.totalorder %s22, 0
      %p43 = por %p41, %p42
      %p44 = scmp.ne.s32.totalorder %s30, %s31
      %p45 = scmp.eq.s32.totalorder %s23, 1
      %p46 = por %p44, %p45
      %p48 = scmp.ne.s32.totalorder %s31, %s47
      %p49 = scmp.eq.s32.totalorder %s23, 0
      %p50 = por %p48, %p49
      %s52 = sadd.s32 %s51, 1
      %p55 = scmp.eq.s32.totalorder %s17, 1
      %p56 = scmp.ne.s32.totalorder %s51, %s53
      %p57 = scmp.eq.s32.totalorder %s17, 0
      %p58 = por %p56, %p57
      %p59 = scmp.ne.s32.totalorder %s51, %s53
      %p60 = scmp.eq.s32.totalorder %s22, 1
      %p61 = por %p59, %p60
      %p62 = scmp.ne.s32.totalorder %s53, %s54
      %p63 = scmp.eq.s32.totalorder %s22, 0
      %p64 = por %p62, %p63
      %p65 = scmp.ne.s32.totalorder %s53, %s54
      %p66 = scmp.eq.s32.totalorder %s23, 1
      %p67 = por %p65, %p66
      %p69 = scmp.ne.s32.totalorder %s54, %s68
      %p70 = scmp.eq.s32.totalorder %s23, 0
      %p71 = por %p69, %p70
      %s73 = sadd.s32 %s72, 1
      %p76 = scmp.eq.s32.totalorder %s17, 1
      %p77 = scmp.ne.s32.totalorder %s72, %s74
      %p78 = scmp.eq.s32.totalorder %s17, 0
      %p79 = por %p77, %p78
      %p80 = scmp.ne.s32.totalorder %s72, %s74
      %p81 = scmp.eq.s32.totalorder %s22, 1
      %p82 = por %p80, %p81
      %p83 = scmp.ne.s32.totalorder %s74, %s75
      %p84 = scmp.eq.s32.totalorder %s22, 0
      %p85 = por %p83, %p84
      %p86 = scmp.ne.s32.totalorder %s74, %s75
      %p87 = scmp.eq.s32.totalorder %s23, 1
      %p88 = por %p86, %p87
      %p90 = scmp.ne.s32.totalorder %s75, %s89
      %p91 = scmp.eq.s32.totalorder %s23, 0
      %p92 = por %p90, %p91
      %s93 = ssub.s32 %s17, %s24
      %p94 = scmp.eq.s32.totalorder %s93, 0
      %s96 = sadd.s32 %s95, 1
      %s97 = scalar_select %p94, %s95, %s96
      %p100 = pneg %p94
      %p101 = scmp.eq.s32.totalorder %s17, 1
      %p102 = por %p100, %p101
      %p103 = scmp.ne.s32.totalorder %s95, %s98
      %p104 = scmp.eq.s32.totalorder %s17, 0
      %p105 = por %p103, %p104
      %p106 = scmp.ne.s32.totalorder %s95, %s98
      %p107 = scmp.eq.s32.totalorder %s22, 1
      %p108 = por %p106, %p107
      %p109 = scmp.ne.s32.totalorder %s98, %s99
      %p110 = scmp.eq.s32.totalorder %s22, 0
      %p111 = por %p109, %p110
      %p112 = scmp.ne.s32.totalorder %s98, %s99
      %p113 = scmp.eq.s32.totalorder %s23, 1
      %p114 = por %p112, %p113
      %p116 = scmp.ne.s32.totalorder %s99, %s115
      %p117 = scmp.eq.s32.totalorder %s23, 0
      %p118 = por %p116, %p117
      %p119 = scmp.le.s32.totalorder 1, %s17
      %p120 = scmp.lt.s32.totalorder %s17, 3
      %p121 = pnand %p119, %p120
      %p122 = pneg %p121
      // Predicated region
      $region9: #{tpu_custom_call.1} parent=5 // pred_check
        _
      $region10: #{tpu_custom_call.1} parent=5 // pred_check_branch
        %124 = sbr.rel (%p121) target = $region12
      $region11: #{tpu_custom_call.1} parent=5 // pred_region
        %s125 = ssub.s32 %s17, 1
        // Predicated region
        $region13: #{tpu_custom_call.1} parent=11 // pred_check
          %p126 = pneg %p64
        $region14: #{tpu_custom_call.1} parent=11 // pred_check_branch
          %128 = sbr.rel (%p126) target = $region16
        $region15: #{tpu_custom_call.1} parent=11 // pred_region
          _
        $region16: #{tpu_custom_call.1} parent=11 // pred_fallthru
          _
        // Predicated region
        $region17: #{tpu_custom_call.1} parent=11 // pred_check
          %p129 = pneg %p85
        $region18: #{tpu_custom_call.1} parent=11 // pred_check_branch
          %131 = sbr.rel (%p129) target = $region20
        $region19: #{tpu_custom_call.1} parent=11 // pred_region
          _
        $region20: #{tpu_custom_call.1} parent=11 // pred_fallthru
          _
      $region12: #{tpu_custom_call.1} parent=5 // pred_fallthru
        _
      %p132 = scmp.lt.s32.totalorder %s17, 2
      // Predicated region
      $region21: #{tpu_custom_call.1} parent=5 // pred_check
        %p133 = pneg %p132
      $region22: #{tpu_custom_call.1} parent=5 // pred_check_branch
        %135 = sbr.rel (%p133) target = $region24
      $region23: #{tpu_custom_call.1} parent=5 // pred_region
        // Predicated region
        $region25: #{tpu_custom_call.1} parent=23 // pred_check
          %p136 = pneg %p37
        $region26: #{tpu_custom_call.1} parent=23 // pred_check_branch
          %138 = sbr.rel (%p136) target = $region28
        $region27: #{tpu_custom_call.1} parent=23 // pred_region
          %s139 = sand.u32 %s27, 1
          %s140 = scalar_lea.sflag [#allocation4], %s139
          %s141 = sand.u32 %s27, 1
          %s142 = smul.addr %s141, 192
          %s143 = scalar_lea.vmem [#allocation3], %s142
          %s144 = smul.u32 4, %s17
          %s146 = ssub.s32 3072, 3072
          %147 = vsyncadd %s140, %s146
          %s148 = smul.addr %s144, 128
          %s149 = scalar_lea.hbm %s0, %s148
          %s150 = sshll.u32 %s143, 4
          %s151 = int_to_ptr.vmem [resolvable:$true] %s150
          %156 = dma.hbm_to_vmem [thread:$0]  %s149, 3072, %s151, %s140, 1024, 512, 32
        $region28: #{tpu_custom_call.1} parent=23 // pred_fallthru
          _
      $region24: #{tpu_custom_call.1} parent=5 // pred_fallthru
        _
      %p157 = scmp.le.s32.totalorder 1, %s17
      %p158 = scmp.lt.s32.totalorder %s17, 3
      %p159 = pnand %p157, %p158
      %p160 = pneg %p159
      // Predicated region
      $region29: #{tpu_custom_call.1} parent=5 // pred_check
        _
      $region30: #{tpu_custom_call.1} parent=5 // pred_check_branch
        %162 = sbr.rel (%p159) target = $region32
      $region31: #{tpu_custom_call.1} parent=5 // pred_region
        %s163 = ssub.s32 %s17, 1
        %s164 = sand.u32 %s30, 1
        %s165 = scalar_lea.sflag [#allocation4], %s164
        %s166 = sand.u32 %s30, 1
        %s167 = smul.addr %s166, 192
        %s168 = scalar_lea.vmem [#allocation3], %s167
        // Predicated region
        $region33: #{tpu_custom_call.1} parent=31 // pred_check
          %p169 = pneg %p43
        $region34: #{tpu_custom_call.1} parent=31 // pred_check_branch
          %171 = sbr.rel (%p169) target = $region36
        $region35: #{tpu_custom_call.1} parent=31 // pred_region
          %172 = dma.done %s165, 3072
        $region36: #{tpu_custom_call.1} parent=31 // pred_fallthru
          _
        %s173 = sand.u32 %s30, 1
        %s174 = scalar_lea.sflag [#allocation4], %s173
        %s175 = sand.u32 %s30, 1
        %s176 = smul.addr %s175, 192
        %s177 = scalar_lea.vmem [#allocation3], %s176
        %p178 = pneg %p43
        %p179 = pneg %p40
        %p180 = pneg %p64
        %p181 = pneg %p61
        %p182 = pneg %p85
        %p183 = pneg %p82
        %p184 = pneg %p111
        %p185 = pneg %p108
        %s186 = sand.u32 %s98, 1
        %s187 = scalar_lea.sflag [#allocation5], %s186
        %s188 = sand.u32 %s98, 1
        %s189 = smul.addr %s188, 4
        %s190 = scalar_lea.vmem [#allocation6], %s189
        %s191 = smul.u32 4, %s22
        %s192 = smul.u32 4, %s22
        %v193 = vld [vmem:[%s168] sm:$0xff]
        %v194 = vld [vmem:[%s168 + $0x8] sm:$0xff]
        %v195 = vld [vmem:[%s168 + $0x10] sm:$0xff]
        %v196 = vld [vmem:[%s168 + $0x18] sm:$0xff]
        %v197 = vld [vmem:[%s168 + $0x20] sm:$0xff]
        %v198 = vld [vmem:[%s168 + $0x28] sm:$0xff]
        %v199 = vld [vmem:[%s168 + $0x30] sm:$0xff]
        %v200 = vld [vmem:[%s168 + $0x38] sm:$0xff]
        %v201 = vld [vmem:[%s168 + $0x40] sm:$0xff]
        %v202 = vld [vmem:[%s168 + $0x48] sm:$0xff]
        %v203 = vld [vmem:[%s168 + $0x50] sm:$0xff]
        %v204 = vld [vmem:[%s168 + $0x58] sm:$0xff]
        %v205 = vld [vmem:[%s168 + $0x60] sm:$0xff]
        %v206 = vld [vmem:[%s168 + $0x68] sm:$0xff]
        %v207 = vld [vmem:[%s168 + $0x70] sm:$0xff]
        %v208 = vld [vmem:[%s168 + $0x78] sm:$0xff]
        %v209 = vld [vmem:[%s168 + $0x80] sm:$0xff]
        %v210 = vld [vmem:[%s168 + $0x88] sm:$0xff]
        %v211 = vld [vmem:[%s168 + $0x90] sm:$0xff]
        %v212 = vld [vmem:[%s168 + $0x98] sm:$0xff]
        %v213 = vld [vmem:[%s168 + $0xa0] sm:$0x3]
        %v214 = vld [vmem:[%s168 + $0xa8] sm:$0x3]
        %v215 = vld [vmem:[%s168 + $0xb0] sm:$0x3]
        %v216 = vld [vmem:[%s168 + $0xb8] sm:$0x3]
        %v217 = vld [vmem:[%s1] sm:$0xff]
        %v218 = vld [vmem:[%s1 + $0x8] sm:$0xff]
        %v219 = vld [vmem:[%s1 + $0x10] sm:$0xff]
        %v220 = vld [vmem:[%s1 + $0x18] sm:$0xff]
        %v221 = vld [vmem:[%s1 + $0x20] sm:$0xff]
        %v222 = vld [vmem:[%s1 + $0x28] sm:$0x3]
        %224 = vset.pattern.permute.xlu0 0
        %225 = vperm.xlu0 %224, %v217
        %v226 = vpop.permute.xlu0 %225
        %229 = vset.pattern.permute.xlu0 0
        %230 = vperm.xlu0 %229, %v218
        %v231 = vpop.permute.xlu0 %230
        %234 = vset.pattern.permute.xlu0 0
        %235 = vperm.xlu0 %234, %v219
        %v236 = vpop.permute.xlu0 %235
        %239 = vset.pattern.permute.xlu0 0
        %240 = vperm.xlu0 %239, %v220
        %v241 = vpop.permute.xlu0 %240
        %244 = vset.pattern.permute.xlu0 0
        %245 = vperm.xlu0 %244, %v221
        %v246 = vpop.permute.xlu0 %245
        %249 = vset.pattern.permute.xlu0 0
        %250 = vperm.xlu0 %249, %v222
        %v251 = vpop.permute.xlu0 %250
        %v253 = vmul.f32 %v193, %v226
        %v254 = vmul.f32 %v194, %v226
        %v255 = vmul.f32 %v195, %v226
        %v256 = vmul.f32 %v196, %v226
        %v257 = vmul.f32 %v197, %v231
        %v258 = vmul.f32 %v198, %v231
        %v259 = vmul.f32 %v199, %v231
        %v260 = vmul.f32 %v200, %v231
        %v261 = vmul.f32 %v201, %v236
        %v262 = vmul.f32 %v202, %v236
        %v263 = vmul.f32 %v203, %v236
        %v264 = vmul.f32 %v204, %v236
        %v265 = vmul.f32 %v205, %v241
        %v266 = vmul.f32 %v206, %v241
        %v267 = vmul.f32 %v207, %v241
        %v268 = vmul.f32 %v208, %v241
        %v269 = vmul.f32 %v209, %v246
        %v270 = vmul.f32 %v210, %v246
        %v271 = vmul.f32 %v211, %v246
        %v272 = vmul.f32 %v212, %v246
        %v273 = vmul.f32 %v213, %v251
        %v274 = vmul.f32 %v214, %v251
        %v275 = vmul.f32 %v215, %v251
        %v276 = vmul.f32 %v216, %v251
        %v277 = vadd.f32 %v253, %v257
        %v278 = vadd.f32 %v277, %v261
        %v279 = vadd.f32 %v278, %v265
        %v280 = vadd.f32 %v279, %v269
        %vm281 = vcmask 1041408
        %v282 = vsel %vm281, %v273, 0.0
        %v283 = vadd.f32 %v280, %v282
        %v284 = vrot.slane %v283, 4
        %v285 = vadd.f32 %v283, %v284
        %v286 = vrot.slane %v285, 2
        %v287 = vadd.f32 %v285, %v286
        %v288 = vrot.slane %v287, 1
        %v289 = vadd.f32 %v287, %v288
        %v290 = vadd.f32 %v254, %v258
        %v291 = vadd.f32 %v290, %v262
        %v292 = vadd.f32 %v291, %v266
        %v293 = vadd.f32 %v292, %v270
        %v294 = vsel %vm281, %v274, 0.0
        %v295 = vadd.f32 %v293, %v294
        %v296 = vrot.slane %v295, 4
        %v297 = vadd.f32 %v295, %v296
        %v298 = vrot.slane %v297, 2
        %v299 = vadd.f32 %v297, %v298
        %v300 = vrot.slane %v299, 1
        %v301 = vadd.f32 %v299, %v300
        %v302 = vadd.f32 %v255, %v259
        %v303 = vadd.f32 %v302, %v263
        %v304 = vadd.f32 %v303, %v267
        %v305 = vadd.f32 %v304, %v271
        %v306 = vsel %vm281, %v275, 0.0
        %v307 = vadd.f32 %v305, %v306
        %v308 = vrot.slane %v307, 4
        %v309 = vadd.f32 %v307, %v308
        %v310 = vrot.slane %v309, 2
        %v311 = vadd.f32 %v309, %v310
        %v312 = vrot.slane %v311, 1
        %v313 = vadd.f32 %v311, %v312
        %v314 = vadd.f32 %v256, %v260
        %v315 = vadd.f32 %v314, %v264
        %v316 = vadd.f32 %v315, %v268
        %v317 = vadd.f32 %v316, %v272
        %v318 = vsel %vm281, %v276, 0.0
        %v319 = vadd.f32 %v317, %v318
        %v320 = vrot.slane %v319, 4
        %v321 = vadd.f32 %v319, %v320
        %v322 = vrot.slane %v321, 2
        %v323 = vadd.f32 %v321, %v322
        %v324 = vrot.slane %v323, 1
        %v325 = vadd.f32 %v323, %v324
        %v326 = vld [vmem:[#allocation2] sm:$0x1]
        %328 = vset.pattern.permute.xlu0 0
        %329 = vperm.xlu0 %328, %v326
        %v330 = vpop.permute.xlu0 %329
        %v332 = vlaneseq
        %v333 = vshrl.u32 %v332, 7
        %v334 = vsub.s32 0, %v333
        %v335 = vrot.slane %v330, %v334
        %v336 = vadd.f32 %v289, %v335
        %v337 = vadd.f32 %v301, %v335
        %v338 = vadd.f32 %v313, %v335
        %v339 = vadd.f32 %v325, %v335
        %v340 = vmul.f32 %v336, 0.5
        %v341 = vmul.f32 %v337, 0.5
        %v342 = vmul.f32 %v338, 0.5
        %v343 = vmul.f32 %v339, 0.5
        %v344 = vtanh.pop %v340
        %v345 = vtanh.pop %v341
        %v346 = vtanh.pop %v342
        %v347 = vtanh.pop %v343
        %v348 = vmul.f32 %v344, 0.5
        %v349 = vmul.f32 %v345, 0.5
        %v350 = vmul.f32 %v346, 0.5
        %v351 = vmul.f32 %v347, 0.5
        %v352 = vadd.f32 %v348, 0.5
        %v353 = vadd.f32 %v349, 0.5
        %v354 = vadd.f32 %v350, 0.5
        %v355 = vadd.f32 %v351, 0.5
        %v360 = vcombine.low %v352, %v353
        %v361 = vcombine.low %v354, %v355
        %v363 = vunpack.c.l.s4 1966171168
        %v364 = vunpack.c.0.s8 %v363
        %v365 = vlaneseq
        %v366 = vshrl.u32 %v365, 7
        %v367 = vsub.s32 %v364, %v366
        %v368 = vrot.slane %v360, %v367
        %v370 = vunpack.c.l.s4 1966171168
        %v371 = vunpack.c.0.s8 %v370
        %v372 = vlaneseq
        %v373 = vshrl.u32 %v372, 7
        %v374 = vsub.s32 %v371, %v373
        %v375 = vrot.slane %v361, %v374
        %v376 = vcombine.low %v368, %v375
        %v378 = vunpack.c.l.s4 1966171168
        %v379 = vunpack.c.0.s8 %v378
        %v380 = vlaneseq
        %v381 = vshrl.u32 %v380, 7
        %v382 = vsub.s32 %v379, %v381
        %v383 = vrot.slane %v376, %v382
        %v385 = vlaneseq
        %vm386 = vcmp.ge.s32.totalorder %v385, 0
        %vm387 = vcmp.lt.s32.totalorder %v385, 512
        %vm388 = vmand %vm386, %vm387
        %389 = vst.msk [vmem:[%s190] sm:$0xf] %vm388, %v383
        %s390 = sand.u32 %s98, 1
        %s391 = scalar_lea.sflag [#allocation5], %s390
        %s392 = sand.u32 %s98, 1
        %s393 = smul.addr %s392, 4
        %s394 = scalar_lea.vmem [#allocation6], %s393
        // Predicated region
        $region37: #{tpu_custom_call.1} parent=31 // pred_check
          %p395 = pneg %p108
        $region38: #{tpu_custom_call.1} parent=31 // pred_check_branch
          %397 = sbr.rel (%p395) target = $region40
        $region39: #{tpu_custom_call.1} parent=31 // pred_region
          %s398 = smul.u32 4, %s22
          %s400 = ssub.s32 64, 64
          %401 = vsyncadd %s391, %s400
          %s402 = smul.addr %s398, 16
          %s403 = scalar_lea.hbm %s3, %s402
          %s405 = sshll.u32 %s394, 4
          %s406 = int_to_ptr.vmem [resolvable:$true] %s405
          %408 = dma.vmem_to_hbm [thread:$0]  %s406, 64, %s403, %s391
        $region40: #{tpu_custom_call.1} parent=31 // pred_fallthru
          _
      $region32: #{tpu_custom_call.1} parent=5 // pred_fallthru
        _
      %p409 = scmp.le.s32.totalorder 2, %s17
      // Predicated region
      $region41: #{tpu_custom_call.1} parent=5 // pred_check
        %p410 = pneg %p409
      $region42: #{tpu_custom_call.1} parent=5 // pred_check_branch
        %412 = sbr.rel (%p410) target = $region44
      $region43: #{tpu_custom_call.1} parent=5 // pred_region
        %s413 = ssub.s32 %s17, 2
        // Predicated region
        $region45: #{tpu_custom_call.1} parent=43 // pred_check
          %p414 = pneg %p114
        $region46: #{tpu_custom_call.1} parent=43 // pred_check_branch
          %416 = sbr.rel (%p414) target = $region48
        $region47: #{tpu_custom_call.1} parent=43 // pred_region
          %s417 = sand.u32 %s99, 1
          %s418 = scalar_lea.sflag [#allocation5], %s417
          %s419 = sand.u32 %s99, 1
          %s420 = smul.addr %s419, 4
          %s421 = scalar_lea.vmem [#allocation6], %s420
          %422 = dma.done %s418, 64
        $region48: #{tpu_custom_call.1} parent=43 // pred_fallthru
          _
      $region44: #{tpu_custom_call.1} parent=5 // pred_fallthru
        _
    $region6: #{tpu_custom_call.1} parent=1 // loop_footer
      %s21 = sadd.s32 1, %s17
    $region7: #{tpu_custom_call.1} parent=1 // loop_footer_branch
      %16 = sbr.rel target = $region3
    $region8: #{tpu_custom_call.1} parent=1 // loop_exit
      _
    %423 = vsyncpa [#allocation4], 1
    %s424 = scalar_lea.sflag [#allocation4], 1
    %425 = vsyncpa %s424, 1
    %426 = vsyncpa [#allocation5], 1
    %s427 = scalar_lea.sflag [#allocation5], 1
    %428 = vsyncpa %s427, 1

</llo_original>
